<compile_context>
chip_gen: v5e
topology: v5e:2x2
jax: 0.10.0
libtpu: 0.0.40
codegen_flags: <defaults>
</compile_context>

<pallas_src>
import functools

import jax
import jax.numpy as jnp
import numpy as np
from jax.experimental import pallas as pl
from jax.experimental.pallas import tpu as pltpu

LANE = 128


def _round_up(x, m):
    return ((x + m - 1) // m) * m


# ----------------------------------------------------------------------------
# Pallas kernel: 5 dense layers with ReLU in between, weights VMEM-resident.
# bf16 operands on the MXU, f32 accumulation, bf16 output store.
# ----------------------------------------------------------------------------
def dnn_kernel(x_ref, w1_ref, b1_ref, w2_ref, b2_ref, w3_ref, b3_ref,
               w4_ref, b4_ref, w5_ref, b5_ref, out_ref):
    h = x_ref[...].astype(jnp.bfloat16)
    h = jnp.maximum(
        jnp.dot(h, w1_ref[...], preferred_element_type=jnp.float32) + b1_ref[...],
        0.0).astype(jnp.bfloat16)
    h = jnp.maximum(
        jnp.dot(h, w2_ref[...], preferred_element_type=jnp.float32) + b2_ref[...],
        0.0).astype(jnp.bfloat16)
    h = jnp.maximum(
        jnp.dot(h, w3_ref[...], preferred_element_type=jnp.float32) + b3_ref[...],
        0.0).astype(jnp.bfloat16)
    h = jnp.maximum(
        jnp.dot(h, w4_ref[...], preferred_element_type=jnp.float32) + b4_ref[...],
        0.0).astype(jnp.bfloat16)
    out_ref[...] = (
        jnp.dot(h, w5_ref[...], preferred_element_type=jnp.float32) + b5_ref[...]
    ).astype(out_ref.dtype)


# ----------------------------------------------------------------------------
# Parameter construction (deterministic, PyTorch-Linear-style uniform init)
# ----------------------------------------------------------------------------
def _linear_init(key, fan_in, fan_out):
    kw, kb = jax.random.split(key)
    bound = 1.0 / np.sqrt(fan_in)
    # stored transposed (in, out) so the kernel does x @ W + b directly
    w = jax.random.uniform(kw, (fan_in, fan_out), jnp.float32, -bound, bound)
    b = jax.random.uniform(kb, (1, fan_out), jnp.float32, -bound, bound)
    return w, b


def make_dnn_params(key, n_features, input_dim, group_stacking, list_grps, out_dim):
    """Raw (unfolded / unpadded) parameters of the module."""
    n_grp = len(list_grps) if group_stacking else 0
    keys = jax.random.split(key, 5 + max(n_grp, 1))
    params = {}

    if group_stacking:
        stacked_dim = int(input_dim[-1])
        w_stack = np.zeros((n_features, stacked_dim), np.float32)
        b_stack = np.zeros((1, stacked_dim), np.float32)
        for grp_ind, grp in enumerate(list_grps):
            off = int(input_dim[grp_ind])
            width = int(input_dim[grp_ind + 1]) - off
            wg, bg = _linear_init(keys[5 + grp_ind], len(grp), width)
            w_stack[np.asarray(grp), off:off + width] = np.asarray(wg)
            b_stack[0, off:off + width] = np.asarray(bg[0])
        params["ws"] = jnp.asarray(w_stack)
        params["bs"] = jnp.asarray(b_stack)
        mlp_in = stacked_dim
    else:
        mlp_in = int(input_dim)

    dims = [mlp_in, 50, 40, 30, 20, out_dim]
    for i in range(5):
        w, b = _linear_init(keys[i], dims[i], dims[i + 1])
        params[f"w{i + 1}"] = w
        params[f"b{i + 1}"] = b
    return params


def pack_kernel_params(raw, group_stacking):
    """Fold the group-stacking layer into layer 1 (exact: no activation in
    between), zero-pad every layer width up to a 128-lane multiple (exact:
    ReLU(0)=0 and zero weight rows/cols contribute nothing), and cast the
    weights to bf16 (MXU-native).  Biases stay f32 (added post-accumulation)."""
    w1, b1 = raw["w1"], raw["b1"]
    if group_stacking:
        w1 = raw["ws"] @ raw["w1"]                 # (n_features, 50)
        b1 = raw["bs"] @ raw["w1"] + raw["b1"]

    ws = [w1, raw["w2"], raw["w3"], raw["w4"], raw["w5"]]
    bs = [b1, raw["b2"], raw["b3"], raw["b4"], raw["b5"]]
    packed = {}
    for i, (w, b) in enumerate(zip(ws, bs), start=1):
        k, n = w.shape
        kp = k if i == 1 else _round_up(k, LANE)   # layer-1 input = raw features
        npad = _round_up(n, LANE)
        wp = jnp.zeros((kp, npad), jnp.float32).at[:k, :n].set(w)
        bp = jnp.zeros((1, npad), jnp.float32).at[:, :n].set(b)
        packed[f"w{i}"] = wp.astype(jnp.bfloat16)  # bf16 MXU operands
        packed[f"b{i}"] = bp                       # f32 bias on the f32 accumulator
    return packed


# ----------------------------------------------------------------------------
# Wrapper calling pallas_call: batch-tiled grid, weights resident across steps
# ----------------------------------------------------------------------------
@functools.partial(jax.jit, static_argnames=("out_dim", "block_batch"))
def dnn_forward(x, kparams, out_dim, block_batch=2048):
    batch, n_features = x.shape
    # Only pad to the 8-sublane multiple (<= 7 rows) - never a full tile copy.
    pb8 = _round_up(batch, 8)
    if pb8 != batch:
        x = jnp.pad(x, ((0, pb8 - batch), (0, 0)))
    # Batch tile: multiple of 8 sublanes, capped by padded batch. Partial last
    # blocks are handled by Pallas (masked writeback), so pb8 need not divide tb.
    tb = min(int(block_batch), pb8)
    grid = (pl.cdiv(pb8, tb),)
    out_pad = kparams["w5"].shape[1]               # lane-dense output width (128)

    weights = (kparams["w1"], kparams["b1"], kparams["w2"], kparams["b2"],
               kparams["w3"], kparams["b3"], kparams["w4"], kparams["b4"],
               kparams["w5"], kparams["b5"])
    # Constant index_map -> each weight/bias DMA'd once, VMEM-resident.
    w_specs = [pl.BlockSpec(w.shape, lambda i: (0, 0)) for w in weights]

    flops = 2 * pb8 * sum(kparams[f"w{j}"].shape[0] * kparams[f"w{j}"].shape[1]
                          for j in range(1, 6))
    bytes_accessed = (4 * x.size                                   # f32 input read
                      + sum(int(np.prod(w.shape)) * w.dtype.itemsize
                            for w in weights)                      # bf16 W / f32 b
                      + 2 * pb8 * out_pad)                         # bf16 output write

    out = pl.pallas_call(
        dnn_kernel,
        out_shape=jax.ShapeDtypeStruct((pb8, out_pad), jnp.bfloat16),
        grid=grid,
        in_specs=[pl.BlockSpec((tb, n_features), lambda i: (i, 0))] + w_specs,
        out_specs=pl.BlockSpec((tb, out_pad), lambda i: (i, 0)),
        compiler_params=pltpu.CompilerParams(
            dimension_semantics=("parallel",),        # megacore sharding on v7x
            vmem_limit_bytes=32 * 1024 * 1024),        # plenty at tb<=4096 bf16
        cost_estimate=pl.CostEstimate(flops=flops, transcendentals=0,
                                      bytes_accessed=bytes_accessed),
    )(x, *weights)
    return out[:batch, :out_dim].astype(jnp.float32)


# ----------------------------------------------------------------------------
# Pure-JAX reference (unfolded, unpadded, f32) for a sanity check
# ----------------------------------------------------------------------------
def dnn_reference(x, raw, group_stacking):
    h = x
    if group_stacking:
        h = h @ raw["ws"] + raw["bs"]
    for i in range(1, 5):
        h = jnp.maximum(h @ raw[f"w{i}"] + raw[f"b{i}"], 0.0)
    return h @ raw["w5"] + raw["b5"]


if __name__ == "__main__":
    key = jax.random.PRNGKey(0)
    kx, kp = jax.random.split(key)

    # Small config consistent with the module's constructor:
    #   group_stacking=True, 3 groups over 12 raw features,
    #   input_dim = cumulative stacked offsets -> stacked dim = 8, out_dim = 3.
    batch = 8
    n_features = 12
    list_grps = [[0, 1, 2, 3], [4, 5, 6], [7, 8, 9, 10, 11]]
    input_dim = [0, 3, 5, 8]
    out_dim = 3
    group_stacking = True

    x = jax.random.normal(kx, (batch, n_features), jnp.float32)
    raw = make_dnn_params(kp, n_features, input_dim, group_stacking,
                          list_grps, out_dim)
    kparams = pack_kernel_params(raw, group_stacking)

    y = dnn_forward(x, kparams, out_dim, block_batch=2048)
    jax.block_until_ready(y)

    # bf16 MXU operands + bf16 output store -> loosened tolerance vs f32 ref.
    y_ref = dnn_reference(x, raw, group_stacking)
    np.testing.assert_allclose(np.asarray(y), np.asarray(y_ref),
                               rtol=5e-2, atol=5e-2)

    print("KERNEL_OK")
</pallas_src>

<mosaic_0001>
module attributes {stable_mosaic.version = 11 : i64} {
  func.func @dnn_kernel(%arg0: i32, %arg1: memref<8x12xf32, #tpu.memory_space<vmem>>, %arg2: memref<12x128xbf16, #tpu.memory_space<vmem>>, %arg3: memref<1x128xf32, #tpu.memory_space<vmem>>, %arg4: memref<128x128xbf16, #tpu.memory_space<vmem>>, %arg5: memref<1x128xf32, #tpu.memory_space<vmem>>, %arg6: memref<128x128xbf16, #tpu.memory_space<vmem>>, %arg7: memref<1x128xf32, #tpu.memory_space<vmem>>, %arg8: memref<128x128xbf16, #tpu.memory_space<vmem>>, %arg9: memref<1x128xf32, #tpu.memory_space<vmem>>, %arg10: memref<128x128xbf16, #tpu.memory_space<vmem>>, %arg11: memref<1x128xf32, #tpu.memory_space<vmem>>, %arg12: memref<8x128xbf16, #tpu.memory_space<vmem>>) attributes {dimension_semantics = [#tpu.dimension_semantics<parallel>], iteration_bounds = array<i64: 1>, scalar_prefetch = 0 : i64, scratch_operands = 0 : i64, tpu.core_type = #tpu.core_type<tc>, window_params = [{transform_indices = @transform_0, window_bounds = array<i64: 8, 12>}, {pipeline_mode = #tpu.pipeline_mode<synchronous>, transform_indices = @transform_1, window_bounds = array<i64: 12, 128>}, {pipeline_mode = #tpu.pipeline_mode<synchronous>, transform_indices = @transform_2, window_bounds = array<i64: 1, 128>}, {pipeline_mode = #tpu.pipeline_mode<synchronous>, transform_indices = @transform_3, window_bounds = array<i64: 128, 128>}, {pipeline_mode = #tpu.pipeline_mode<synchronous>, transform_indices = @transform_4, window_bounds = array<i64: 1, 128>}, {pipeline_mode = #tpu.pipeline_mode<synchronous>, transform_indices = @transform_5, window_bounds = array<i64: 128, 128>}, {pipeline_mode = #tpu.pipeline_mode<synchronous>, transform_indices = @transform_6, window_bounds = array<i64: 1, 128>}, {pipeline_mode = #tpu.pipeline_mode<synchronous>, transform_indices = @transform_7, window_bounds = array<i64: 128, 128>}, {pipeline_mode = #tpu.pipeline_mode<synchronous>, transform_indices = @transform_8, window_bounds = array<i64: 1, 128>}, {pipeline_mode = #tpu.pipeline_mode<synchronous>, transform_indices = @transform_9, window_bounds = array<i64: 128, 128>}, {pipeline_mode = #tpu.pipeline_mode<synchronous>, transform_indices = @transform_10, window_bounds = array<i64: 1, 128>}, {transform_indices = @transform_11, window_bounds = array<i64: 8, 128>}]} {
    %c0 = arith.constant 0 : index
    %c0_0 = arith.constant 0 : index
    %0 = vector.load %arg1[%c0, %c0_0] : memref<8x12xf32, #tpu.memory_space<vmem>>, vector<8x12xf32>
    %1 = arith.truncf %0 : vector<8x12xf32> to vector<8x12xbf16>
    %c0_1 = arith.constant 0 : index
    %c0_2 = arith.constant 0 : index
    %2 = vector.load %arg2[%c0_1, %c0_2] : memref<12x128xbf16, #tpu.memory_space<vmem>>, vector<12x128xbf16>
    %cst = arith.constant dense<0.000000e+00> : vector<8x128xf32>
    %3 = tpu.matmul %1, %2, %cst {dimension_numbers = #tpu.dot_dimension_numbers<[1], [0], [0], [1], [0, 0, 1, 1], [], []>} : vector<8x12xbf16>, vector<12x128xbf16>, vector<8x128xf32> -> vector<8x128xf32>
    %c0_3 = arith.constant 0 : index
    %c0_4 = arith.constant 0 : index
    %4 = vector.load %arg3[%c0_3, %c0_4] : memref<1x128xf32, #tpu.memory_space<vmem>>, vector<1x128xf32>
    %5 = vector.broadcast %4 : vector<1x128xf32> to vector<8x128xf32>
    %6 = arith.addf %3, %5 : vector<8x128xf32>
    %cst_5 = arith.constant 0.000000e+00 : f32
    %7 = vector.broadcast %cst_5 : f32 to vector<8x128xf32>
    %8 = arith.maximumf %6, %7 : vector<8x128xf32>
    %9 = arith.truncf %8 : vector<8x128xf32> to vector<8x128xbf16>
    %c0_6 = arith.constant 0 : index
    %c0_7 = arith.constant 0 : index
    %10 = vector.load %arg4[%c0_6, %c0_7] : memref<128x128xbf16, #tpu.memory_space<vmem>>, vector<128x128xbf16>
    %cst_8 = arith.constant dense<0.000000e+00> : vector<8x128xf32>
    %11 = tpu.matmul %9, %10, %cst_8 {dimension_numbers = #tpu.dot_dimension_numbers<[1], [0], [0], [1], [0, 0, 1, 1], [], []>} : vector<8x128xbf16>, vector<128x128xbf16>, vector<8x128xf32> -> vector<8x128xf32>
    %c0_9 = arith.constant 0 : index
    %c0_10 = arith.constant 0 : index
    %12 = vector.load %arg5[%c0_9, %c0_10] : memref<1x128xf32, #tpu.memory_space<vmem>>, vector<1x128xf32>
    %13 = vector.broadcast %12 : vector<1x128xf32> to vector<8x128xf32>
    %14 = arith.addf %11, %13 : vector<8x128xf32>
    %cst_11 = arith.constant 0.000000e+00 : f32
    %15 = vector.broadcast %cst_11 : f32 to vector<8x128xf32>
    %16 = arith.maximumf %14, %15 : vector<8x128xf32>
    %17 = arith.truncf %16 : vector<8x128xf32> to vector<8x128xbf16>
    %c0_12 = arith.constant 0 : index
    %c0_13 = arith.constant 0 : index
    %18 = vector.load %arg6[%c0_12, %c0_13] : memref<128x128xbf16, #tpu.memory_space<vmem>>, vector<128x128xbf16>
    %cst_14 = arith.constant dense<0.000000e+00> : vector<8x128xf32>
    %19 = tpu.matmul %17, %18, %cst_14 {dimension_numbers = #tpu.dot_dimension_numbers<[1], [0], [0], [1], [0, 0, 1, 1], [], []>} : vector<8x128xbf16>, vector<128x128xbf16>, vector<8x128xf32> -> vector<8x128xf32>
    %c0_15 = arith.constant 0 : index
    %c0_16 = arith.constant 0 : index
    %20 = vector.load %arg7[%c0_15, %c0_16] : memref<1x128xf32, #tpu.memory_space<vmem>>, vector<1x128xf32>
    %21 = vector.broadcast %20 : vector<1x128xf32> to vector<8x128xf32>
    %22 = arith.addf %19, %21 : vector<8x128xf32>
    %cst_17 = arith.constant 0.000000e+00 : f32
    %23 = vector.broadcast %cst_17 : f32 to vector<8x128xf32>
    %24 = arith.maximumf %22, %23 : vector<8x128xf32>
    %25 = arith.truncf %24 : vector<8x128xf32> to vector<8x128xbf16>
    %c0_18 = arith.constant 0 : index
    %c0_19 = arith.constant 0 : index
    %26 = vector.load %arg8[%c0_18, %c0_19] : memref<128x128xbf16, #tpu.memory_space<vmem>>, vector<128x128xbf16>
    %cst_20 = arith.constant dense<0.000000e+00> : vector<8x128xf32>
    %27 = tpu.matmul %25, %26, %cst_20 {dimension_numbers = #tpu.dot_dimension_numbers<[1], [0], [0], [1], [0, 0, 1, 1], [], []>} : vector<8x128xbf16>, vector<128x128xbf16>, vector<8x128xf32> -> vector<8x128xf32>
    %c0_21 = arith.constant 0 : index
    %c0_22 = arith.constant 0 : index
    %28 = vector.load %arg9[%c0_21, %c0_22] : memref<1x128xf32, #tpu.memory_space<vmem>>, vector<1x128xf32>
    %29 = vector.broadcast %28 : vector<1x128xf32> to vector<8x128xf32>
    %30 = arith.addf %27, %29 : vector<8x128xf32>
    %cst_23 = arith.constant 0.000000e+00 : f32
    %31 = vector.broadcast %cst_23 : f32 to vector<8x128xf32>
    %32 = arith.maximumf %30, %31 : vector<8x128xf32>
    %33 = arith.truncf %32 : vector<8x128xf32> to vector<8x128xbf16>
    %c0_24 = arith.constant 0 : index
    %c0_25 = arith.constant 0 : index
    %34 = vector.load %arg10[%c0_24, %c0_25] : memref<128x128xbf16, #tpu.memory_space<vmem>>, vector<128x128xbf16>
    %cst_26 = arith.constant dense<0.000000e+00> : vector<8x128xf32>
    %35 = tpu.matmul %33, %34, %cst_26 {dimension_numbers = #tpu.dot_dimension_numbers<[1], [0], [0], [1], [0, 0, 1, 1], [], []>} : vector<8x128xbf16>, vector<128x128xbf16>, vector<8x128xf32> -> vector<8x128xf32>
    %c0_27 = arith.constant 0 : index
    %c0_28 = arith.constant 0 : index
    %36 = vector.load %arg11[%c0_27, %c0_28] : memref<1x128xf32, #tpu.memory_space<vmem>>, vector<1x128xf32>
    %37 = vector.broadcast %36 : vector<1x128xf32> to vector<8x128xf32>
    %38 = arith.addf %35, %37 : vector<8x128xf32>
    %39 = arith.truncf %38 : vector<8x128xf32> to vector<8x128xbf16>
    %c0_29 = arith.constant 0 : index
    %c0_30 = arith.constant 0 : index
    %40 = vector.load %arg12[%c0_29, %c0_30] : memref<8x128xbf16, #tpu.memory_space<vmem>>, vector<8x128xbf16>
    tpu.vector_store %arg12[%c0_29, %c0_30], %39 {strides = array<i32>} : memref<8x128xbf16, #tpu.memory_space<vmem>>, vector<8x128xbf16>,
    return
  }
  func.func @transform_0(%arg0: i32) -> (i32, i32) {
    %c0_i32 = arith.constant 0 : i32
    %c0_i32_0 = arith.constant 0 : i32
    return %arg0, %c0_i32 : i32, i32
  }
  func.func @transform_1(%arg0: i32) -> (i32, i32) {
    %c0_i32 = arith.constant 0 : i32
    %c0_i32_0 = arith.constant 0 : i32
    %c0_i32_1 = arith.constant 0 : i32
    return %c0_i32, %c0_i32_0 : i32, i32
  }
  func.func @transform_2(%arg0: i32) -> (i32, i32) {
    %c0_i32 = arith.constant 0 : i32
    %c0_i32_0 = arith.constant 0 : i32
    %c0_i32_1 = arith.constant 0 : i32
    return %c0_i32, %c0_i32_0 : i32, i32
  }
  func.func @transform_3(%arg0: i32) -> (i32, i32) {
    %c0_i32 = arith.constant 0 : i32
    %c0_i32_0 = arith.constant 0 : i32
    %c0_i32_1 = arith.constant 0 : i32
    return %c0_i32, %c0_i32_0 : i32, i32
  }
  func.func @transform_4(%arg0: i32) -> (i32, i32) {
    %c0_i32 = arith.constant 0 : i32
    %c0_i32_0 = arith.constant 0 : i32
    %c0_i32_1 = arith.constant 0 : i32
    return %c0_i32, %c0_i32_0 : i32, i32
  }
  func.func @transform_5(%arg0: i32) -> (i32, i32) {
    %c0_i32 = arith.constant 0 : i32
    %c0_i32_0 = arith.constant 0 : i32
    %c0_i32_1 = arith.constant 0 : i32
    return %c0_i32, %c0_i32_0 : i32, i32
  }
  func.func @transform_6(%arg0: i32) -> (i32, i32) {
    %c0_i32 = arith.constant 0 : i32
    %c0_i32_0 = arith.constant 0 : i32
    %c0_i32_1 = arith.constant 0 : i32
    return %c0_i32, %c0_i32_0 : i32, i32
  }
  func.func @transform_7(%arg0: i32) -> (i32, i32) {
    %c0_i32 = arith.constant 0 : i32
    %c0_i32_0 = arith.constant 0 : i32
    %c0_i32_1 = arith.constant 0 : i32
    return %c0_i32, %c0_i32_0 : i32, i32
  }
  func.func @transform_8(%arg0: i32) -> (i32, i32) {
    %c0_i32 = arith.constant 0 : i32
    %c0_i32_0 = arith.constant 0 : i32
    %c0_i32_1 = arith.constant 0 : i32
    return %c0_i32, %c0_i32_0 : i32, i32
  }
  func.func @transform_9(%arg0: i32) -> (i32, i32) {
    %c0_i32 = arith.constant 0 : i32
    %c0_i32_0 = arith.constant 0 : i32
    %c0_i32_1 = arith.constant 0 : i32
    return %c0_i32, %c0_i32_0 : i32, i32
  }
  func.func @transform_10(%arg0: i32) -> (i32, i32) {
    %c0_i32 = arith.constant 0 : i32
    %c0_i32_0 = arith.constant 0 : i32
    %c0_i32_1 = arith.constant 0 : i32
    return %c0_i32, %c0_i32_0 : i32, i32
  }
  func.func @transform_11(%arg0: i32) -> (i32, i32) {
    %c0_i32 = arith.constant 0 : i32
    %c0_i32_0 = arith.constant 0 : i32
    return %arg0, %c0_i32 : i32, i32
  }
}

</mosaic_0001>

<llo_original>
// kernel: dnn_forward.1
$region0: #{dnn_forward.1}
  #allocation0 [shape = 'u32[]', space=smem, size = 0x4, offset = 0x4, fixed_abs, tag = 'smem constant byte address 0x4 - core index']
  #allocation1 [shape = 'u32[72,128]{1,0:T(1,128)}', space=vmem, size = 0x9000, scoped, tag = 'internal scratch']
  %s0 = inlined_call_operand.hbm [shape: f32[8,12], index: 0, kind: input, shape index: {}]
  %s1 = inlined_call_operand.hbm [shape: bf16[12,128], index: 1, kind: input, shape index: {}]
  %s2 = inlined_call_operand.hbm [shape: f32[1,128], index: 2, kind: input, shape index: {}]
  %s3 = inlined_call_operand.hbm [shape: bf16[128,128], index: 3, kind: input, shape index: {}]
  %s4 = inlined_call_operand.vmem [shape: f32[1,128], index: 4, kind: input, shape index: {}]
  %s5 = inlined_call_operand.hbm [shape: bf16[128,128], index: 5, kind: input, shape index: {}]
  %s6 = inlined_call_operand.vmem [shape: f32[1,128], index: 6, kind: input, shape index: {}]
  %s7 = inlined_call_operand.hbm [shape: bf16[128,128], index: 7, kind: input, shape index: {}]
  %s8 = inlined_call_operand.vmem [shape: f32[1,128], index: 8, kind: input, shape index: {}]
  %s9 = inlined_call_operand.hbm [shape: bf16[128,128], index: 9, kind: input, shape index: {}]
  %s10 = inlined_call_operand.vmem [shape: f32[1,128], index: 10, kind: input, shape index: {}]
  %s11 = inlined_call_operand.vmem [shape: bf16[8,128], index: 11, kind: output, shape index: {}]
  %s12 = sld [smem:[#allocation0]]
  $region82: #{dnn_forward.1} parent=0
    _
  %s14 = ssub.s32 1, %s12
  %s15 = scalar_select 0, %s14, %s12
  $region1: #{dnn_forward.1} parent=0
    #allocation2 [shape = 'u8[4096]{0}', space=vmem, size = 0x1000, scoped, tag = 'input window, operand 0, single buffered']
    #allocation3 [shape = 's32[1]{0}', space=sflag, size = 0x4, scoped, tag = 'scoped memory for dnn_forward.1']
    #allocation4 [shape = 'u8[4096]{0}', space=vmem, size = 0x1000, scoped, tag = 'input window, operand 1, single buffered']
    #allocation5 [shape = 's32[1]{0}', space=sflag, size = 0x4, scoped, tag = 'scoped memory for dnn_forward.1']
    #allocation6 [shape = 'u8[512]{0}', space=vmem, size = 0x400, scoped, tag = 'input window, operand 2, single buffered']
    #allocation7 [shape = 'u8[32768]{0}', space=vmem, size = 0x8000, scoped, tag = 'input window, operand 3, single buffered']
    #allocation8 [shape = 's32[1]{0}', space=sflag, size = 0x4, scoped, tag = 'scoped memory for dnn_forward.1']
    #allocation9 [shape = 'u8[32768]{0}', space=vmem, size = 0x8000, scoped, tag = 'input window, operand 5, single buffered']
    #allocation10 [shape = 'u8[32768]{0}', space=vmem, size = 0x8000, scoped, tag = 'input window, operand 7, single buffered']
    #allocation11 [shape = 's32[1]{0}', space=sflag, size = 0x4, scoped, tag = 'scoped memory for dnn_forward.1']
    #allocation12 [shape = 'u8[32768]{0}', space=vmem, size = 0x8000, scoped, tag = 'input window, operand 9, single buffered']
    %16 = vsyncpa [#allocation3], 0
    %17 = vsyncpa [#allocation5], 0
    %18 = vsyncpa [#allocation8], 0
    %19 = vsyncpa [#allocation11], 0
    // Predicated region
    $region2: #{dnn_forward.1} parent=1 // pred_check
      _
    $region3: #{dnn_forward.1} parent=1 // pred_check_branch
      %21 = sbr.rel (0) target = $region5
    $region4: #{dnn_forward.1} parent=1 // pred_region
      %23 = vsyncadd [#allocation3], 0
      %s25 = sshll.u32 %s0, 4
      %s26 = int_to_ptr.hbm [resolvable:$true] %s25
      %s27 = sshll.u32 [#allocation2], 4
      %s28 = int_to_ptr.vmem [resolvable:$true] %s27
      %30 = dma.hbm_to_vmem [thread:$0]  %s26, 128, %s28, [#allocation3]
    $region5: #{dnn_forward.1} parent=1 // pred_fallthru
      _
    // Predicated region
    $region6: #{dnn_forward.1} parent=1 // pred_check
      _
    $region7: #{dnn_forward.1} parent=1 // pred_check_branch
      %32 = sbr.rel (0) target = $region9
    $region8: #{dnn_forward.1} parent=1 // pred_region
      %34 = vsyncadd [#allocation5], 0
      %s35 = sshll.u32 %s1, 4
      %s36 = int_to_ptr.hbm [resolvable:$true] %s35
      %s37 = sshll.u32 [#allocation4], 4
      %s38 = int_to_ptr.vmem [resolvable:$true] %s37
      %43 = dma.hbm_to_vmem [thread:$0]  %s36, 128, %s38, [#allocation5], 64, 64, 4
    $region9: #{dnn_forward.1} parent=1 // pred_fallthru
      _
    // Predicated region
    $region10: #{dnn_forward.1} parent=1 // pred_check
      _
    $region11: #{dnn_forward.1} parent=1 // pred_check_branch
      %45 = sbr.rel (0) target = $region13
    $region12: #{dnn_forward.1} parent=1 // pred_region
      %47 = vsyncadd [#allocation5], 0
      %s49 = sshll.u32 %s2, 4
      %s50 = int_to_ptr.hbm [resolvable:$true] %s49
      %s51 = sshll.u32 [#allocation6], 4
      %s52 = int_to_ptr.vmem [resolvable:$true] %s51
      %54 = dma.hbm_to_vmem [thread:$0]  %s50, 16, %s52, [#allocation5]
    $region13: #{dnn_forward.1} parent=1 // pred_fallthru
      _
    // Predicated region
    $region14: #{dnn_forward.1} parent=1 // pred_check
      _
    $region15: #{dnn_forward.1} parent=1 // pred_check_branch
      %56 = sbr.rel (0) target = $region17
    $region16: #{dnn_forward.1} parent=1 // pred_region
      %58 = vsyncadd [#allocation8], 0
      %s59 = sshll.u32 %s3, 4
      %s60 = int_to_ptr.hbm [resolvable:$true] %s59
      %s61 = sshll.u32 [#allocation7], 4
      %s62 = int_to_ptr.vmem [resolvable:$true] %s61
      %67 = dma.hbm_to_vmem [thread:$0]  %s60, 1024, %s62, [#allocation8], 64, 64, 4
    $region17: #{dnn_forward.1} parent=1 // pred_fallthru
      _
    // Predicated region
    $region18: #{dnn_forward.1} parent=1 // pred_check
      _
    $region19: #{dnn_forward.1} parent=1 // pred_check_branch
      %69 = sbr.rel (0) target = $region21
    $region20: #{dnn_forward.1} parent=1 // pred_region
      _
    $region21: #{dnn_forward.1} parent=1 // pred_fallthru
      _
    // Predicated region
    $region22: #{dnn_forward.1} parent=1 // pred_check
      _
    $region23: #{dnn_forward.1} parent=1 // pred_check_branch
      %71 = sbr.rel (0) target = $region25
    $region24: #{dnn_forward.1} parent=1 // pred_region
      %73 = vsyncadd [#allocation8], 0
      %s74 = sshll.u32 %s5, 4
      %s75 = int_to_ptr.hbm [resolvable:$true] %s74
      %s76 = sshll.u32 [#allocation9], 4
      %s77 = int_to_ptr.vmem [resolvable:$true] %s76
      %82 = dma.hbm_to_vmem [thread:$0]  %s75, 1024, %s77, [#allocation8], 64, 64, 4
    $region25: #{dnn_forward.1} parent=1 // pred_fallthru
      _
    // Predicated region
    $region26: #{dnn_forward.1} parent=1 // pred_check
      _
    $region27: #{dnn_forward.1} parent=1 // pred_check_branch
      %84 = sbr.rel (0) target = $region29
    $region28: #{dnn_forward.1} parent=1 // pred_region
      _
    $region29: #{dnn_forward.1} parent=1 // pred_fallthru
      _
    // Predicated region
    $region30: #{dnn_forward.1} parent=1 // pred_check
      _
    $region31: #{dnn_forward.1} parent=1 // pred_check_branch
      %86 = sbr.rel (0) target = $region33
    $region32: #{dnn_forward.1} parent=1 // pred_region
      %88 = vsyncadd [#allocation11], 0
      %s89 = sshll.u32 %s7, 4
      %s90 = int_to_ptr.hbm [resolvable:$true] %s89
      %s91 = sshll.u32 [#allocation10], 4
      %s92 = int_to_ptr.vmem [resolvable:$true] %s91
      %97 = dma.hbm_to_vmem [thread:$0]  %s90, 1024, %s92, [#allocation11], 64, 64, 4
    $region33: #{dnn_forward.1} parent=1 // pred_fallthru
      _
    // Predicated region
    $region34: #{dnn_forward.1} parent=1 // pred_check
      _
    $region35: #{dnn_forward.1} parent=1 // pred_check_branch
      %99 = sbr.rel (0) target = $region37
    $region36: #{dnn_forward.1} parent=1 // pred_region
      _
    $region37: #{dnn_forward.1} parent=1 // pred_fallthru
      _
    // Predicated region
    $region38: #{dnn_forward.1} parent=1 // pred_check
      _
    $region39: #{dnn_forward.1} parent=1 // pred_check_branch
      %101 = sbr.rel (0) target = $region41
    $region40: #{dnn_forward.1} parent=1 // pred_region
      %103 = vsyncadd [#allocation11], 0
      %s104 = sshll.u32 %s9, 4
      %s105 = int_to_ptr.hbm [resolvable:$true] %s104
      %s106 = sshll.u32 [#allocation12], 4
      %s107 = int_to_ptr.vmem [resolvable:$true] %s106
      %112 = dma.hbm_to_vmem [thread:$0]  %s105, 1024, %s107, [#allocation11], 64, 64, 4
    $region41: #{dnn_forward.1} parent=1 // pred_fallthru
      _
    // Predicated region
    $region42: #{dnn_forward.1} parent=1 // pred_check
      _
    $region43: #{dnn_forward.1} parent=1 // pred_check_branch
      %114 = sbr.rel (0) target = $region45
    $region44: #{dnn_forward.1} parent=1 // pred_region
      _
    $region45: #{dnn_forward.1} parent=1 // pred_fallthru
      _
    // Predicated region
    $region46: #{dnn_forward.1} parent=1 // pred_check
      _
    $region47: #{dnn_forward.1} parent=1 // pred_check_branch
      %116 = sbr.rel (0) target = $region49
    $region48: #{dnn_forward.1} parent=1 // pred_region
      %118 = dma.done [#allocation3], 128
    $region49: #{dnn_forward.1} parent=1 // pred_fallthru
      _
    // Predicated region
    $region50: #{dnn_forward.1} parent=1 // pred_check
      _
    $region51: #{dnn_forward.1} parent=1 // pred_check_branch
      %120 = sbr.rel (0) target = $region53
    $region52: #{dnn_forward.1} parent=1 // pred_region
      %122 = dma.done [#allocation5], 128
    $region53: #{dnn_forward.1} parent=1 // pred_fallthru
      _
    // Predicated region
    $region54: #{dnn_forward.1} parent=1 // pred_check
      _
    $region55: #{dnn_forward.1} parent=1 // pred_check_branch
      %124 = sbr.rel (0) target = $region57
    $region56: #{dnn_forward.1} parent=1 // pred_region
      %126 = dma.done [#allocation5], 16
    $region57: #{dnn_forward.1} parent=1 // pred_fallthru
      _
    // Predicated region
    $region58: #{dnn_forward.1} parent=1 // pred_check
      _
    $region59: #{dnn_forward.1} parent=1 // pred_check_branch
      %128 = sbr.rel (0) target = $region61
    $region60: #{dnn_forward.1} parent=1 // pred_region
      %130 = dma.done [#allocation8], 1024
    $region61: #{dnn_forward.1} parent=1 // pred_fallthru
      _
    // Predicated region
    $region62: #{dnn_forward.1} parent=1 // pred_check
      _
    $region63: #{dnn_forward.1} parent=1 // pred_check_branch
      %132 = sbr.rel (0) target = $region65
    $region64: #{dnn_forward.1} parent=1 // pred_region
      %134 = dma.done [#allocation8], 1024
    $region65: #{dnn_forward.1} parent=1 // pred_fallthru
      _
    // Predicated region
    $region66: #{dnn_forward.1} parent=1 // pred_check
      _
    $region67: #{dnn_forward.1} parent=1 // pred_check_branch
      %136 = sbr.rel (0) target = $region69
    $region68: #{dnn_forward.1} parent=1 // pred_region
      %138 = dma.done [#allocation11], 1024
    $region69: #{dnn_forward.1} parent=1 // pred_fallthru
      _
    // Predicated region
    $region70: #{dnn_forward.1} parent=1 // pred_check
      _
    $region71: #{dnn_forward.1} parent=1 // pred_check_branch
      %140 = sbr.rel (0) target = $region73
    $region72: #{dnn_forward.1} parent=1 // pred_region
      %142 = dma.done [#allocation11], 1024
    $region73: #{dnn_forward.1} parent=1 // pred_fallthru
      _
    %v144 = vld [vmem:[#allocation2] sm:$0xff]
    %v145 = vpack.c.bf16 %v144, %v144
    %v146 = vld [vmem:[#allocation4] sm:$0xf]
    %v147 = vld [vmem:[#allocation4 + $0x4] sm:$0x3]
    %v148 = vld [vmem:[#allocation6] sm:$0x1]
    %v150 = vperm.slane %v148, 0
    %v154 = vunpack.c.l.b16 %v146
    %v155 = vunpack.c.l.b16 %v147
    %v156 = vpack.c.b16 %v155, %v154
    %vm157 = vcmask 97280
    %v159 = vsel %vm157, %v145, 0
    %vm161 = vcmask 1045504
    %v163 = vsel %vm161, %v156, 0
    %165 = vmatpush.bf16.msra.mxu0 0
    %166 = vmatpush.bf16.msra.mxu0 0
    %167 = vmatpush.bf16.msra.mxu0 0
    %168 = vmatpush.bf16.msra.mxu0 0
    %169 = vmatpush.bf16.msra.mxu0 0
    %170 = vmatpush.bf16.msra.mxu0 0
    %171 = vmatpush.bf16.msra.mxu0 0
    %172 = vmatpush.bf16.msra.mxu0 %v163
    %173 = vmatmul.bf16.gmra.mxu0 %v159
    %v174 = vpop.f32.mrf.mxu0
    %v175 = vadd.f32 %v150, %v174
    %v176 = vpop.f32.mrf.mxu0
    %177 = vdwg.mxu0
    %v178 = vmax.f32 %v175, 0.0
    %v179 = vpack.c.bf16 %v178, %v178
    %v180 = vld [vmem:[#allocation7] sm:$0xf]
    %v181 = vld [vmem:[#allocation7 + $0x4] sm:$0xf]
    %v182 = vld [vmem:[#allocation7 + $0x8] sm:$0xf]
    %v183 = vld [vmem:[#allocation7 + $0xc] sm:$0xf]
    %v184 = vld [vmem:[#allocation7 + $0x10] sm:$0xf]
    %v185 = vld [vmem:[#allocation7 + $0x14] sm:$0xf]
    %v186 = vld [vmem:[#allocation7 + $0x18] sm:$0xf]
    %v187 = vld [vmem:[#allocation7 + $0x1c] sm:$0xf]
    %v188 = vld [vmem:[#allocation7 + $0x20] sm:$0xf]
    %v189 = vld [vmem:[#allocation7 + $0x24] sm:$0xf]
    %v190 = vld [vmem:[#allocation7 + $0x28] sm:$0xf]
    %v191 = vld [vmem:[#allocation7 + $0x2c] sm:$0xf]
    %v192 = vld [vmem:[#allocation7 + $0x30] sm:$0xf]
    %v193 = vld [vmem:[#allocation7 + $0x34] sm:$0xf]
    %v194 = vld [vmem:[#allocation7 + $0x38] sm:$0xf]
    %v195 = vld [vmem:[#allocation7 + $0x3c] sm:$0xf]
    %v196 = vld [vmem:[%s4] sm:$0x1]
    %v198 = vperm.slane %v196, 0
    %v216 = vunpack.c.l.b16 %v180
    %v217 = vunpack.c.l.b16 %v181
    %v218 = vunpack.c.l.b16 %v182
    %v219 = vunpack.c.l.b16 %v183
    %v220 = vunpack.c.l.b16 %v184
    %v221 = vunpack.c.l.b16 %v185
    %v222 = vunpack.c.l.b16 %v186
    %v223 = vunpack.c.l.b16 %v187
    %v224 = vunpack.c.l.b16 %v188
    %v225 = vunpack.c.l.b16 %v189
    %v226 = vunpack.c.l.b16 %v190
    %v227 = vunpack.c.l.b16 %v191
    %v228 = vunpack.c.l.b16 %v192
    %v229 = vunpack.c.l.b16 %v193
    %v230 = vunpack.c.l.b16 %v194
    %v231 = vunpack.c.l.b16 %v195
    %v232 = vpack.c.b16 %v217, %v216
    %v233 = vpack.c.b16 %v219, %v218
    %v234 = vpack.c.b16 %v221, %v220
    %v235 = vpack.c.b16 %v223, %v222
    %v236 = vpack.c.b16 %v225, %v224
    %v237 = vpack.c.b16 %v227, %v226
    %v238 = vpack.c.b16 %v229, %v228
    %v239 = vpack.c.b16 %v231, %v230
    %248 = vmatpush.bf16.msra.mxu0 %v239
    %249 = vmatpush.bf16.msra.mxu0 %v238
    %250 = vmatpush.bf16.msra.mxu0 %v237
    %251 = vmatpush.bf16.msra.mxu0 %v236
    %252 = vmatpush.bf16.msra.mxu0 %v235
    %253 = vmatpush.bf16.msra.mxu0 %v234
    %254 = vmatpush.bf16.msra.mxu0 %v233
    %255 = vmatpush.bf16.msra.mxu0 %v232
    %256 = vmatmul.bf16.gmra.mxu0 %v179
    %v257 = vpop.f32.mrf.mxu0
    %v258 = vadd.f32 %v198, %v257
    %v259 = vpop.f32.mrf.mxu0
    %260 = vdwg.mxu0
    %v261 = vmax.f32 %v258, 0.0
    %v262 = vpack.c.bf16 %v261, %v261
    %v263 = vld [vmem:[#allocation9] sm:$0xf]
    %v264 = vld [vmem:[#allocation9 + $0x4] sm:$0xf]
    %v265 = vld [vmem:[#allocation9 + $0x8] sm:$0xf]
    %v266 = vld [vmem:[#allocation9 + $0xc] sm:$0xf]
    %v267 = vld [vmem:[#allocation9 + $0x10] sm:$0xf]
    %v268 = vld [vmem:[#allocation9 + $0x14] sm:$0xf]
    %v269 = vld [vmem:[#allocation9 + $0x18] sm:$0xf]
    %v270 = vld [vmem:[#allocation9 + $0x1c] sm:$0xf]
    %v271 = vld [vmem:[#allocation9 + $0x20] sm:$0xf]
    %v272 = vld [vmem:[#allocation9 + $0x24] sm:$0xf]
    %v273 = vld [vmem:[#allocation9 + $0x28] sm:$0xf]
    %v274 = vld [vmem:[#allocation9 + $0x2c] sm:$0xf]
    %v275 = vld [vmem:[#allocation9 + $0x30] sm:$0xf]
    %v276 = vld [vmem:[#allocation9 + $0x34] sm:$0xf]
    %v277 = vld [vmem:[#allocation9 + $0x38] sm:$0xf]
    %v278 = vld [vmem:[#allocation9 + $0x3c] sm:$0xf]
    %v279 = vld [vmem:[%s6] sm:$0x1]
    %v281 = vperm.slane %v279, 0
    %v299 = vunpack.c.l.b16 %v263
    %v300 = vunpack.c.l.b16 %v264
    %v301 = vunpack.c.l.b16 %v265
    %v302 = vunpack.c.l.b16 %v266
    %v303 = vunpack.c.l.b16 %v267
    %v304 = vunpack.c.l.b16 %v268
    %v305 = vunpack.c.l.b16 %v269
    %v306 = vunpack.c.l.b16 %v270
    %v307 = vunpack.c.l.b16 %v271
    %v308 = vunpack.c.l.b16 %v272
    %v309 = vunpack.c.l.b16 %v273
    %v310 = vunpack.c.l.b16 %v274
    %v311 = vunpack.c.l.b16 %v275
    %v312 = vunpack.c.l.b16 %v276
    %v313 = vunpack.c.l.b16 %v277
    %v314 = vunpack.c.l.b16 %v278
    %v315 = vpack.c.b16 %v300, %v299
    %v316 = vpack.c.b16 %v302, %v301
    %v317 = vpack.c.b16 %v304, %v303
    %v318 = vpack.c.b16 %v306, %v305
    %v319 = vpack.c.b16 %v308, %v307
    %v320 = vpack.c.b16 %v310, %v309
    %v321 = vpack.c.b16 %v312, %v311
    %v322 = vpack.c.b16 %v314, %v313
    %331 = vmatpush.bf16.msra.mxu0 %v322
    %332 = vmatpush.bf16.msra.mxu0 %v321
    %333 = vmatpush.bf16.msra.mxu0 %v320
    %334 = vmatpush.bf16.msra.mxu0 %v319
    %335 = vmatpush.bf16.msra.mxu0 %v318
    %336 = vmatpush.bf16.msra.mxu0 %v317
    %337 = vmatpush.bf16.msra.mxu0 %v316
    %338 = vmatpush.bf16.msra.mxu0 %v315
    %339 = vmatmul.bf16.gmra.mxu0 %v262
    %v340 = vpop.f32.mrf.mxu0
    %v341 = vadd.f32 %v281, %v340
    %v342 = vpop.f32.mrf.mxu0
    %343 = vdwg.mxu0
    %v344 = vmax.f32 %v341, 0.0
    %v345 = vpack.c.bf16 %v344, %v344
    %v346 = vld [vmem:[#allocation10] sm:$0xf]
    %v347 = vld [vmem:[#allocation10 + $0x4] sm:$0xf]
    %v348 = vld [vmem:[#allocation10 + $0x8] sm:$0xf]
    %v349 = vld [vmem:[#allocation10 + $0xc] sm:$0xf]
    %v350 = vld [vmem:[#allocation10 + $0x10] sm:$0xf]
    %v351 = vld [vmem:[#allocation10 + $0x14] sm:$0xf]
    %v352 = vld [vmem:[#allocation10 + $0x18] sm:$0xf]
    %v353 = vld [vmem:[#allocation10 + $0x1c] sm:$0xf]
    %v354 = vld [vmem:[#allocation10 + $0x20] sm:$0xf]
    %v355 = vld [vmem:[#allocation10 + $0x24] sm:$0xf]
    %v356 = vld [vmem:[#allocation10 + $0x28] sm:$0xf]
    %v357 = vld [vmem:[#allocation10 + $0x2c] sm:$0xf]
    %v358 = vld [vmem:[#allocation10 + $0x30] sm:$0xf]
    %v359 = vld [vmem:[#allocation10 + $0x34] sm:$0xf]
    %v360 = vld [vmem:[#allocation10 + $0x38] sm:$0xf]
    %v361 = vld [vmem:[#allocation10 + $0x3c] sm:$0xf]
    %v362 = vld [vmem:[%s8] sm:$0x1]
    %v364 = vperm.slane %v362, 0
    %v382 = vunpack.c.l.b16 %v346
    %v383 = vunpack.c.l.b16 %v347
    %v384 = vunpack.c.l.b16 %v348
    %v385 = vunpack.c.l.b16 %v349
    %v386 = vunpack.c.l.b16 %v350
    %v387 = vunpack.c.l.b16 %v351
    %v388 = vunpack.c.l.b16 %v352
    %v389 = vunpack.c.l.b16 %v353
    %v390 = vunpack.c.l.b16 %v354
    %v391 = vunpack.c.l.b16 %v355
    %v392 = vunpack.c.l.b16 %v356
    %v393 = vunpack.c.l.b16 %v357
    %v394 = vunpack.c.l.b16 %v358
    %v395 = vunpack.c.l.b16 %v359
    %v396 = vunpack.c.l.b16 %v360
    %v397 = vunpack.c.l.b16 %v361
    %v398 = vpack.c.b16 %v383, %v382
    %v399 = vpack.c.b16 %v385, %v384
    %v400 = vpack.c.b16 %v387, %v386
    %v401 = vpack.c.b16 %v389, %v388
    %v402 = vpack.c.b16 %v391, %v390
    %v403 = vpack.c.b16 %v393, %v392
    %v404 = vpack.c.b16 %v395, %v394
    %v405 = vpack.c.b16 %v397, %v396
    %414 = vmatpush.bf16.msra.mxu0 %v405
    %415 = vmatpush.bf16.msra.mxu0 %v404
    %416 = vmatpush.bf16.msra.mxu0 %v403
    %417 = vmatpush.bf16.msra.mxu0 %v402
    %418 = vmatpush.bf16.msra.mxu0 %v401
    %419 = vmatpush.bf16.msra.mxu0 %v400
    %420 = vmatpush.bf16.msra.mxu0 %v399
    %421 = vmatpush.bf16.msra.mxu0 %v398
    %422 = vmatmul.bf16.gmra.mxu0 %v345
    %v423 = vpop.f32.mrf.mxu0
    %v424 = vadd.f32 %v364, %v423
    %v425 = vpop.f32.mrf.mxu0
    %426 = vdwg.mxu0
    %v427 = vmax.f32 %v424, 0.0
    %v428 = vpack.c.bf16 %v427, %v427
    %v429 = vld [vmem:[#allocation12] sm:$0xf]
    %v430 = vld [vmem:[#allocation12 + $0x4] sm:$0xf]
    %v431 = vld [vmem:[#allocation12 + $0x8] sm:$0xf]
    %v432 = vld [vmem:[#allocation12 + $0xc] sm:$0xf]
    %v433 = vld [vmem:[#allocation12 + $0x10] sm:$0xf]
    %v434 = vld [vmem:[#allocation12 + $0x14] sm:$0xf]
    %v435 = vld [vmem:[#allocation12 + $0x18] sm:$0xf]
    %v436 = vld [vmem:[#allocation12 + $0x1c] sm:$0xf]
    %v437 = vld [vmem:[#allocation12 + $0x20] sm:$0xf]
    %v438 = vld [vmem:[#allocation12 + $0x24] sm:$0xf]
    %v439 = vld [vmem:[#allocation12 + $0x28] sm:$0xf]
    %v440 = vld [vmem:[#allocation12 + $0x2c] sm:$0xf]
    %v441 = vld [vmem:[#allocation12 + $0x30] sm:$0xf]
    %v442 = vld [vmem:[#allocation12 + $0x34] sm:$0xf]
    %v443 = vld [vmem:[#allocation12 + $0x38] sm:$0xf]
    %v444 = vld [vmem:[#allocation12 + $0x3c] sm:$0xf]
    %v445 = vld [vmem:[%s10] sm:$0x1]
    %v447 = vperm.slane %v445, 0
    %v465 = vunpack.c.l.b16 %v429
    %v466 = vunpack.c.l.b16 %v430
    %v467 = vunpack.c.l.b16 %v431
    %v468 = vunpack.c.l.b16 %v432
    %v469 = vunpack.c.l.b16 %v433
    %v470 = vunpack.c.l.b16 %v434
    %v471 = vunpack.c.l.b16 %v435
    %v472 = vunpack.c.l.b16 %v436
    %v473 = vunpack.c.l.b16 %v437
    %v474 = vunpack.c.l.b16 %v438
    %v475 = vunpack.c.l.b16 %v439
    %v476 = vunpack.c.l.b16 %v440
    %v477 = vunpack.c.l.b16 %v441
    %v478 = vunpack.c.l.b16 %v442
    %v479 = vunpack.c.l.b16 %v443
    %v480 = vunpack.c.l.b16 %v444
    %v481 = vpack.c.b16 %v466, %v465
    %v482 = vpack.c.b16 %v468, %v467
    %v483 = vpack.c.b16 %v470, %v469
    %v484 = vpack.c.b16 %v472, %v471
    %v485 = vpack.c.b16 %v474, %v473
    %v486 = vpack.c.b16 %v476, %v475
    %v487 = vpack.c.b16 %v478, %v477
    %v488 = vpack.c.b16 %v480, %v479
    %497 = vmatpush.bf16.msra.mxu0 %v488
    %498 = vmatpush.bf16.msra.mxu0 %v487
    %499 = vmatpush.bf16.msra.mxu0 %v486
    %500 = vmatpush.bf16.msra.mxu0 %v485
    %501 = vmatpush.bf16.msra.mxu0 %v484
    %502 = vmatpush.bf16.msra.mxu0 %v483
    %503 = vmatpush.bf16.msra.mxu0 %v482
    %504 = vmatpush.bf16.msra.mxu0 %v481
    %505 = vmatmul.bf16.gmra.mxu0 %v428
    %v506 = vpop.f32.mrf.mxu0
    %v507 = vadd.f32 %v447, %v506
    %v508 = vpop.f32.mrf.mxu0
    %509 = vdwg.mxu0
    %v510 = vpack.c.bf16 %v507, %v507
    %511 = vst [vmem:[%s11] sm:$0xf] %v510
    // Predicated region
    $region74: #{dnn_forward.1} parent=1 // pred_check
      _
    $region75: #{dnn_forward.1} parent=1 // pred_check_branch
      %513 = sbr.rel (0) target = $region77
    $region76: #{dnn_forward.1} parent=1 // pred_region
      _
    $region77: #{dnn_forward.1} parent=1 // pred_fallthru
      _
    // Predicated region
    $region78: #{dnn_forward.1} parent=1 // pred_check
      _
    $region79: #{dnn_forward.1} parent=1 // pred_check_branch
      %515 = sbr.rel (0) target = $region81
    $region80: #{dnn_forward.1} parent=1 // pred_region
      _
    $region81: #{dnn_forward.1} parent=1 // pred_fallthru
      _
    %516 = vsyncpa [#allocation3], 1
    %517 = vsyncpa [#allocation5], 1
    %518 = vsyncpa [#allocation8], 1
    %519 = vsyncpa [#allocation11], 1

</llo_original>
